<compile_context>
chip_gen: v7x
topology: tpu7x:2x2x1
jax: 0.10.0
libtpu: 0.0.40
codegen_flags: <defaults>
</compile_context>

<pallas_src>
import math

import jax
import jax.numpy as jnp
from jax import lax
from jax.experimental import pallas as pl
from jax.experimental.pallas import tpu as pltpu

_INV_SQRT2 = 1.0 / math.sqrt(2.0)


def _round_up(x, m):
    return ((x + m - 1) // m) * m


def mlp_kernel(x_ref, w1_ref, b1_ref, w2_ref, b2_ref, o_ref, acc_ref):
    # Grid: (row tiles, H tiles).  H axis is the reduction axis (last).
    # x_ref:  (tm, Ep)   current row tile (resident across the H axis)
    # w1_ref: (Ep, th)   fc1 weight slice for this H tile
    # b1_ref: (1, th)    fc1 bias slice
    # w2_ref: (th, Ep)   fc2 weight slice for this H tile
    # b2_ref: (1, Ep)    fc2 bias (constant block, fetched once)
    # o_ref:  (tm, Ep)   output row tile (resident across the H axis)
    # acc_ref:(tm, Ep)   f32 accumulator scratch
    h_idx = pl.program_id(1)
    last = pl.num_programs(1) - 1

    # Initialize the accumulator with the fc2 bias (broadcast over rows).
    @pl.when(h_idx == 0)
    def _():
        acc_ref[...] = jnp.broadcast_to(
            b2_ref[...].astype(jnp.float32), acc_ref.shape)

    # fc1 on this H slice (MXU, f32 accumulation) + bias.
    h = jnp.dot(x_ref[...], w1_ref[...], preferred_element_type=jnp.float32)
    h = h + b1_ref[...].astype(jnp.float32)

    # Exact (erf-based) GELU in f32 — matches torch.nn.functional.gelu default.
    h = 0.5 * h * (1.0 + lax.erf(h * _INV_SQRT2))

    # TODO(synk): dropout omitted (identity in eval/inference mode).

    # fc2 partial product for this H slice (f32 accumulation on the MXU).
    partial = jnp.dot(h.astype(w2_ref.dtype), w2_ref[...],
                      preferred_element_type=jnp.float32)

    @pl.when(h_idx != last)
    def _():
        acc_ref[...] += partial

    # Last H tile: fold the partial product into the output store directly.
    @pl.when(h_idx == last)
    def _():
        o_ref[...] = (acc_ref[...] + partial).astype(o_ref.dtype)


def mlp_forward(x, w1, b1, w2, b2, *, tm=256, th=512, compute_dtype=None):
    """x: (B, S, E) -> (B, S, E).  Weights: w1 (E,H), b1 (H,), w2 (H,E), b2 (E,).

    compute_dtype: optionally cast matmul operands (e.g. jnp.bfloat16) for full
    MXU rate; accumulation and bias/GELU math stay in f32 either way.
    """
    B, S, E = x.shape
    Ein, H = w1.shape
    assert Ein == E and w2.shape == (H, E) and b1.shape == (H,) and b2.shape == (E,)
    M = B * S
    out_dtype = x.dtype

    op_dtype = compute_dtype if compute_dtype is not None else x.dtype
    sublane = 16 if jnp.dtype(op_dtype) == jnp.bfloat16 else 8

    # Lane-dense last dim.
    Ep = _round_up(E, 128)

    # Balanced row tiling: split M as evenly as possible into <= tm tiles so
    # padding (wasted matmul rows) stays minimal for arbitrary M.
    Mp0 = _round_up(M, sublane)
    n_m = max(1, -(-Mp0 // tm))
    tm_eff = _round_up(-(-Mp0 // n_m), sublane)
    Mp = n_m * tm_eff

    # Balanced H tiling: same idea along the hidden (reduction) dim.
    Hp0 = _round_up(H, 128)
    n_h = max(1, -(-Hp0 // th))
    th_eff = _round_up(-(-Hp0 // n_h), 128)
    Hp = n_h * th_eff

    # Wrapper-side zero padding (padded lanes/rows contribute exactly zero and
    # are sliced off at the end).
    x2 = jnp.pad(x.reshape(M, E), ((0, Mp - M), (0, Ep - E)))
    w1p = jnp.pad(w1, ((0, Ep - E), (0, Hp - H)))
    w2p = jnp.pad(w2, ((0, Hp - H), (0, Ep - E)))
    b1p = jnp.pad(b1, (0, Hp - H)).reshape(1, Hp).astype(jnp.float32)
    b2p = jnp.pad(b2, (0, Ep - E)).reshape(1, Ep).astype(jnp.float32)

    if compute_dtype is not None:
        x2 = x2.astype(compute_dtype)
        w1p = w1p.astype(compute_dtype)
        w2p = w2p.astype(compute_dtype)

    # Scoped-VMEM budget: double-buffered tiles + f32 accumulator + margin,
    # clamped to [default 32 MiB, v7x physical 64 MiB].
    isz = jnp.dtype(x2.dtype).itemsize
    vmem = 2 * isz * (tm_eff * Ep + Ep * th_eff + th_eff * Ep + tm_eff * Ep)
    vmem += 2 * 4 * (th_eff + Ep)          # biases (f32)
    vmem += 4 * tm_eff * Ep + (2 << 20)    # accumulator + margin
    vmem = int(min(max(vmem, 32 << 20), 64 << 20))

    out = pl.pallas_call(
        mlp_kernel,
        out_shape=jax.ShapeDtypeStruct((Mp, Ep), out_dtype),
        grid_spec=pltpu.PrefetchScalarGridSpec(
            num_scalar_prefetch=0,
            grid=(Mp // tm_eff, Hp // th_eff),
            in_specs=[
                pl.BlockSpec((tm_eff, Ep), lambda i, j: (i, 0)),   # x rows
                pl.BlockSpec((Ep, th_eff), lambda i, j: (0, j)),   # w1 H-slice
                pl.BlockSpec((1, th_eff), lambda i, j: (0, j)),    # b1 H-slice
                pl.BlockSpec((th_eff, Ep), lambda i, j: (j, 0)),   # w2 H-slice
                pl.BlockSpec((1, Ep), lambda i, j: (0, 0)),        # b2
            ],
            out_specs=pl.BlockSpec((tm_eff, Ep), lambda i, j: (i, 0)),
            scratch_shapes=[pltpu.VMEM((tm_eff, Ep), jnp.float32)],
        ),
        compiler_params=pltpu.CompilerParams(
            dimension_semantics=("parallel", "arbitrary"),
            vmem_limit_bytes=vmem),
    )(x2, w1p, b1p, w2p, b2p)

    return out[:M, :E].reshape(B, S, E)


def init_params(key, embed_dim, mlp_dim):
    """Deterministic parameter init matching the module's _init_weights."""
    k1, k2, k3, k4 = jax.random.split(key, 4)

    def xavier_uniform(k, fan_in, fan_out):
        bound = math.sqrt(6.0 / (fan_in + fan_out))
        # stored as (in, out) so the kernel does x @ w  (== x @ W.T in torch)
        return jax.random.uniform(k, (fan_in, fan_out), jnp.float32,
                                  minval=-bound, maxval=bound)

    w1 = xavier_uniform(k1, embed_dim, mlp_dim)
    w2 = xavier_uniform(k2, mlp_dim, embed_dim)
    b1 = 1e-6 * jax.random.normal(k3, (mlp_dim,), jnp.float32)
    b2 = 1e-6 * jax.random.normal(k4, (embed_dim,), jnp.float32)
    return w1, b1, w2, b2


def _ref_mlp(x, w1, b1, w2, b2):
    h = x @ w1 + b1
    h = 0.5 * h * (1.0 + lax.erf(h * _INV_SQRT2))
    return h @ w2 + b2


if __name__ == "__main__":
    key = jax.random.PRNGKey(0)

    # Case 1: small config matching the module (batch=2, seq=8, E=32, H=64).
    B, S, E, H = 2, 8, 32, 64
    kx, kp, key = jax.random.split(key, 3)
    x = jax.random.normal(kx, (B, S, E), jnp.float32)
    w1, b1, w2, b2 = init_params(kp, E, H)
    y = jax.block_until_ready(mlp_forward(x, w1, b1, w2, b2))
    y_ref = _ref_mlp(x, w1, b1, w2, b2)
    assert y.shape == (B, S, E)
    assert jnp.allclose(y, y_ref, atol=1e-5, rtol=1e-5)

    # Case 2: non-aligned shapes exercising row padding, E padding and H tiling.
    B2, S2, E2, H2 = 2, 72, 96, 192
    kx2, kp2 = jax.random.split(key)
    x2 = jax.random.normal(kx2, (B2, S2, E2), jnp.float32)
    p2 = init_params(kp2, E2, H2)
    y2 = jax.block_until_ready(mlp_forward(x2, *p2, tm=64, th=128))
    y2_ref = _ref_mlp(x2, *p2)
    assert y2.shape == (B2, S2, E2)
    assert jnp.allclose(y2, y2_ref, atol=1e-5, rtol=1e-5)

    print("KERNEL_OK")
</pallas_src>

<mosaic_0001>
module attributes {stable_mosaic.version = 11 : i64} {
  func.func @mlp_kernel(%arg0: i32, %arg1: i32, %arg2: memref<16x128xf32, #tpu.memory_space<vmem>>, %arg3: memref<128x128xf32, #tpu.memory_space<vmem>>, %arg4: memref<1x128xf32, #tpu.memory_space<vmem>>, %arg5: memref<128x128xf32, #tpu.memory_space<vmem>>, %arg6: memref<1x128xf32, #tpu.memory_space<vmem>>, %arg7: memref<16x128xf32, #tpu.memory_space<vmem>>, %arg8: memref<16x128xf32, #tpu.memory_space<vmem>>) attributes {dimension_semantics = [#tpu.dimension_semantics<parallel>, #tpu.dimension_semantics<arbitrary>], iteration_bounds = array<i64: 1, 1>, scalar_prefetch = 0 : i64, scratch_operands = 1 : i64, tpu.core_type = #tpu.core_type<tc>, window_params = [{transform_indices = @transform_0, window_bounds = array<i64: 16, 128>}, {transform_indices = @transform_1, window_bounds = array<i64: 128, 128>}, {transform_indices = @transform_2, window_bounds = array<i64: 1, 128>}, {transform_indices = @transform_3, window_bounds = array<i64: 128, 128>}, {pipeline_mode = #tpu.pipeline_mode<synchronous>, transform_indices = @transform_4, window_bounds = array<i64: 1, 128>}, {transform_indices = @transform_5, window_bounds = array<i64: 16, 128>}]} {
    %c0_i32 = arith.constant 0 : i32
    %0 = arith.cmpi eq, %arg1, %c0_i32 : i32
    %1 = arith.extui %0 : i1 to i32
    %c0_i32_0 = arith.constant 0 : i32
    %2 = arith.cmpi ne, %1, %c0_i32_0 : i32
    scf.if %2 {
      %c0_16 = arith.constant 0 : index
      %c0_17 = arith.constant 0 : index
      %25 = vector.load %arg6[%c0_16, %c0_17] : memref<1x128xf32, #tpu.memory_space<vmem>>, vector<1x128xf32>
      %26 = vector.shape_cast %25 : vector<1x128xf32> to vector<1x128xf32>
      %27 = vector.broadcast %26 : vector<1x128xf32> to vector<16x128xf32>
      %c0_18 = arith.constant 0 : index
      %c0_19 = arith.constant 0 : index
      %28 = vector.load %arg8[%c0_18, %c0_19] : memref<16x128xf32, #tpu.memory_space<vmem>>, vector<16x128xf32>
      tpu.vector_store %arg8[%c0_18, %c0_19], %27 {strides = array<i32>} : memref<16x128xf32, #tpu.memory_space<vmem>>, vector<16x128xf32>,
    } else {
    }
    %c0 = arith.constant 0 : index
    %c0_1 = arith.constant 0 : index
    %3 = vector.load %arg2[%c0, %c0_1] : memref<16x128xf32, #tpu.memory_space<vmem>>, vector<16x128xf32>
    %c0_2 = arith.constant 0 : index
    %c0_3 = arith.constant 0 : index
    %4 = vector.load %arg3[%c0_2, %c0_3] : memref<128x128xf32, #tpu.memory_space<vmem>>, vector<128x128xf32>
    %cst = arith.constant dense<0.000000e+00> : vector<16x128xf32>
    %5 = tpu.matmul %3, %4, %cst {dimension_numbers = #tpu.dot_dimension_numbers<[1], [0], [0], [1], [0, 0, 1, 1], [], []>} : vector<16x128xf32>, vector<128x128xf32>, vector<16x128xf32> -> vector<16x128xf32>
    %c0_4 = arith.constant 0 : index
    %c0_5 = arith.constant 0 : index
    %6 = vector.load %arg4[%c0_4, %c0_5] : memref<1x128xf32, #tpu.memory_space<vmem>>, vector<1x128xf32>
    %7 = vector.broadcast %6 : vector<1x128xf32> to vector<16x128xf32>
    %8 = arith.addf %5, %7 : vector<16x128xf32>
    %cst_6 = arith.constant 5.000000e-01 : f32
    %9 = vector.broadcast %cst_6 : f32 to vector<16x128xf32>
    %10 = arith.mulf %9, %8 : vector<16x128xf32>
    %cst_7 = arith.constant 0.707106769 : f32
    %11 = vector.broadcast %cst_7 : f32 to vector<16x128xf32>
    %12 = arith.mulf %8, %11 : vector<16x128xf32>
    %13 = math.erf %12 : vector<16x128xf32>
    %cst_8 = arith.constant 1.000000e+00 : f32
    %14 = vector.broadcast %cst_8 : f32 to vector<16x128xf32>
    %15 = arith.addf %14, %13 : vector<16x128xf32>
    %16 = arith.mulf %10, %15 : vector<16x128xf32>
    %c0_9 = arith.constant 0 : index
    %c0_10 = arith.constant 0 : index
    %17 = vector.load %arg5[%c0_9, %c0_10] : memref<128x128xf32, #tpu.memory_space<vmem>>, vector<128x128xf32>
    %cst_11 = arith.constant dense<0.000000e+00> : vector<16x128xf32>
    %18 = tpu.matmul %16, %17, %cst_11 {dimension_numbers = #tpu.dot_dimension_numbers<[1], [0], [0], [1], [0, 0, 1, 1], [], []>} : vector<16x128xf32>, vector<128x128xf32>, vector<16x128xf32> -> vector<16x128xf32>
    %c0_i32_12 = arith.constant 0 : i32
    %19 = arith.cmpi ne, %arg1, %c0_i32_12 : i32
    %20 = arith.extui %19 : i1 to i32
    %c0_i32_13 = arith.constant 0 : i32
    %21 = arith.cmpi ne, %20, %c0_i32_13 : i32
    scf.if %21 {
      %c0_16 = arith.constant 0 : index
      %c0_17 = arith.constant 0 : index
      %25 = vector.load %arg8[%c0_16, %c0_17] : memref<16x128xf32, #tpu.memory_space<vmem>>, vector<16x128xf32>
      %26 = arith.addf %25, %18 : vector<16x128xf32>
      %c0_18 = arith.constant 0 : index
      %c0_19 = arith.constant 0 : index
      %27 = vector.load %arg8[%c0_18, %c0_19] : memref<16x128xf32, #tpu.memory_space<vmem>>, vector<16x128xf32>
      tpu.vector_store %arg8[%c0_18, %c0_19], %26 {strides = array<i32>} : memref<16x128xf32, #tpu.memory_space<vmem>>, vector<16x128xf32>,
    } else {
    }
    %c0_i32_14 = arith.constant 0 : i32
    %22 = arith.cmpi eq, %arg1, %c0_i32_14 : i32
    %23 = arith.extui %22 : i1 to i32
    %c0_i32_15 = arith.constant 0 : i32
    %24 = arith.cmpi ne, %23, %c0_i32_15 : i32
    scf.if %24 {
      %c0_16 = arith.constant 0 : index
      %c0_17 = arith.constant 0 : index
      %25 = vector.load %arg8[%c0_16, %c0_17] : memref<16x128xf32, #tpu.memory_space<vmem>>, vector<16x128xf32>
      %26 = arith.addf %25, %18 : vector<16x128xf32>
      %c0_18 = arith.constant 0 : index
      %c0_19 = arith.constant 0 : index
      %27 = vector.load %arg7[%c0_18, %c0_19] : memref<16x128xf32, #tpu.memory_space<vmem>>, vector<16x128xf32>
      tpu.vector_store %arg7[%c0_18, %c0_19], %26 {strides = array<i32>} : memref<16x128xf32, #tpu.memory_space<vmem>>, vector<16x128xf32>,
    } else {
    }
    return
  }
  func.func @transform_0(%arg0: i32, %arg1: i32) -> (i32, i32) {
    %c0_i32 = arith.constant 0 : i32
    %c0_i32_0 = arith.constant 0 : i32
    return %arg0, %c0_i32 : i32, i32
  }
  func.func @transform_1(%arg0: i32, %arg1: i32) -> (i32, i32) {
    %c0_i32 = arith.constant 0 : i32
    %c0_i32_0 = arith.constant 0 : i32
    return %c0_i32, %arg1 : i32, i32
  }
  func.func @transform_2(%arg0: i32, %arg1: i32) -> (i32, i32) {
    %c0_i32 = arith.constant 0 : i32
    %c0_i32_0 = arith.constant 0 : i32
    return %c0_i32, %arg1 : i32, i32
  }
  func.func @transform_3(%arg0: i32, %arg1: i32) -> (i32, i32) {
    %c0_i32 = arith.constant 0 : i32
    %c0_i32_0 = arith.constant 0 : i32
    return %arg1, %c0_i32 : i32, i32
  }
  func.func @transform_4(%arg0: i32, %arg1: i32) -> (i32, i32) {
    %c0_i32 = arith.constant 0 : i32
    %c0_i32_0 = arith.constant 0 : i32
    %c0_i32_1 = arith.constant 0 : i32
    return %c0_i32, %c0_i32_0 : i32, i32
  }
  func.func @transform_5(%arg0: i32, %arg1: i32) -> (i32, i32) {
    %c0_i32 = arith.constant 0 : i32
    %c0_i32_0 = arith.constant 0 : i32
    return %arg0, %c0_i32 : i32, i32
  }
}

</mosaic_0001>

<llo_original>
// kernel: tpu_custom_call.1
$region0: #{tpu_custom_call.1}
  #allocation0 [shape = 'u32[]', space=smem, size = 0x4, offset = 0x4, fixed_abs, tag = 'smem constant byte address 0x4 - core index']
  #allocation1 [shape = 'u32[144,128]{1,0:T(1,128)}', space=vmem, size = 0x12000, scoped, tag = 'internal scratch']
  #allocation2 [shape = 'f32[16,128]{1,0:T(8,128)}', space=vmem, size = 0x2000, scoped, tag = 'scratch operand']
  %s0 = inlined_call_operand.hbm [shape: f32[16,128], index: 0, kind: input, shape index: {}]
  %s1 = inlined_call_operand.hbm [shape: f32[128,128], index: 1, kind: input, shape index: {}]
  %s2 = inlined_call_operand.vmem [shape: f32[1,128], index: 2, kind: input, shape index: {}]
  %s3 = inlined_call_operand.hbm [shape: f32[128,128], index: 3, kind: input, shape index: {}]
  %s4 = inlined_call_operand.vmem [shape: f32[1,128], index: 4, kind: input, shape index: {}]
  %s5 = inlined_call_operand.hbm [shape: f32[16,128], index: 5, kind: output, shape index: {}]
  %s6 = sld [smem:[#allocation0]]
  $region54: #{tpu_custom_call.1} parent=0
    _
  %s8 = ssub.s32 1, %s6
  %s9 = scalar_select 0, %s8, %s6
  $region1: #{tpu_custom_call.1} parent=0
    #allocation3 [shape = 'u8[8192]{0}', space=vmem, size = 0x2000, scoped, tag = 'input window, operand 0, single buffered']
    #allocation4 [shape = 's32[1]{0}', space=sflag, size = 0x4, scoped, tag = 'scoped memory for tpu_custom_call.1']
    #allocation5 [shape = 's32[1]{0}', space=sflag, size = 0x4, scoped, tag = 'scoped memory for tpu_custom_call.1']
    #allocation6 [shape = 'u8[65536]{0}', space=vmem, size = 0x10000, scoped, tag = 'input window, operand 1, single buffered']
    #allocation7 [shape = 's32[1]{0}', space=sflag, size = 0x4, scoped, tag = 'scoped memory for tpu_custom_call.1']
    #allocation8 [shape = 'u8[65536]{0}', space=vmem, size = 0x10000, scoped, tag = 'input window, operand 3, single buffered']
    #allocation9 [shape = 'u8[8192]{0}', space=vmem, size = 0x2000, scoped, tag = 'output window, operand 0, single buffered']
    %10 = vsyncpa [#allocation4], 0
    %11 = vsyncpa [#allocation7], 0
    %12 = vsyncpa [#allocation5], 0
    // Predicated region
    $region2: #{tpu_custom_call.1} parent=1 // pred_check
      _
    $region3: #{tpu_custom_call.1} parent=1 // pred_check_branch
      %14 = sbr.rel (0) target = $region5
    $region4: #{tpu_custom_call.1} parent=1 // pred_region
      %s16 = ssub.s32 256, 256
      %17 = vsyncadd [#allocation4], %s16
      %s18 = sshll.u32 [#allocation3], 4
      %s19 = int_to_ptr.vmem [resolvable:$true] %s18
      %24 = dma.hbm_to_vmem [thread:$0]  %s0, 256, %s19, [#allocation4], 128, 128, 8
    $region5: #{tpu_custom_call.1} parent=1 // pred_fallthru
      _
    // Predicated region
    $region6: #{tpu_custom_call.1} parent=1 // pred_check
      _
    $region7: #{tpu_custom_call.1} parent=1 // pred_check_branch
      %26 = sbr.rel (0) target = $region9
    $region8: #{tpu_custom_call.1} parent=1 // pred_region
      %s28 = ssub.s32 2048, 2048
      %29 = vsyncadd [#allocation7], %s28
      %s30 = sshll.u32 [#allocation6], 4
      %s31 = int_to_ptr.vmem [resolvable:$true] %s30
      %36 = dma.hbm_to_vmem [thread:$0]  %s1, 2048, %s31, [#allocation7], 128, 128, 8
    $region9: #{tpu_custom_call.1} parent=1 // pred_fallthru
      _
    // Predicated region
    $region10: #{tpu_custom_call.1} parent=1 // pred_check
      _
    $region11: #{tpu_custom_call.1} parent=1 // pred_check_branch
      %38 = sbr.rel (0) target = $region13
    $region12: #{tpu_custom_call.1} parent=1 // pred_region
      _
    $region13: #{tpu_custom_call.1} parent=1 // pred_fallthru
      _
    // Predicated region
    $region14: #{tpu_custom_call.1} parent=1 // pred_check
      _
    $region15: #{tpu_custom_call.1} parent=1 // pred_check_branch
      %40 = sbr.rel (0) target = $region17
    $region16: #{tpu_custom_call.1} parent=1 // pred_region
      %s42 = ssub.s32 2048, 2048
      %43 = vsyncadd [#allocation7], %s42
      %s44 = sshll.u32 [#allocation8], 4
      %s45 = int_to_ptr.vmem [resolvable:$true] %s44
      %50 = dma.hbm_to_vmem [thread:$0]  %s3, 2048, %s45, [#allocation7], 128, 128, 8
    $region17: #{tpu_custom_call.1} parent=1 // pred_fallthru
      _
    // Predicated region
    $region18: #{tpu_custom_call.1} parent=1 // pred_check
      _
    $region19: #{tpu_custom_call.1} parent=1 // pred_check_branch
      %52 = sbr.rel (0) target = $region21
    $region20: #{tpu_custom_call.1} parent=1 // pred_region
      _
    $region21: #{tpu_custom_call.1} parent=1 // pred_fallthru
      _
    // Predicated region
    $region22: #{tpu_custom_call.1} parent=1 // pred_check
      _
    $region23: #{tpu_custom_call.1} parent=1 // pred_check_branch
      %54 = sbr.rel (0) target = $region25
    $region24: #{tpu_custom_call.1} parent=1 // pred_region
      %55 = dma.done [#allocation4], 256
    $region25: #{tpu_custom_call.1} parent=1 // pred_fallthru
      _
    // Predicated region
    $region26: #{tpu_custom_call.1} parent=1 // pred_check
      _
    $region27: #{tpu_custom_call.1} parent=1 // pred_check_branch
      %57 = sbr.rel (0) target = $region29
    $region28: #{tpu_custom_call.1} parent=1 // pred_region
      %58 = dma.done [#allocation7], 2048
    $region29: #{tpu_custom_call.1} parent=1 // pred_fallthru
      _
    // Predicated region
    $region30: #{tpu_custom_call.1} parent=1 // pred_check
      _
    $region31: #{tpu_custom_call.1} parent=1 // pred_check_branch
      %60 = sbr.rel (0) target = $region33
    $region32: #{tpu_custom_call.1} parent=1 // pred_region
      %61 = dma.done [#allocation7], 2048
    $region33: #{tpu_custom_call.1} parent=1 // pred_fallthru
      _
    %p62 = scmp.eq.s32.totalorder 0, 0
    // Predicated region
    $region34: #{tpu_custom_call.1} parent=1 // pred_check
      %p63 = pneg %p62
    $region35: #{tpu_custom_call.1} parent=1 // pred_check_branch
      %65 = sbr.rel (%p63) target = $region37
    $region36: #{tpu_custom_call.1} parent=1 // pred_region
      %v66 = vld [vmem:[%s4] sm:$0x1]
      %v68 = vlaneseq
      %v69 = vshrl.u32 %v68, 7
      %v70 = vsub.s32 0, %v69
      %v71 = vrot.slane %v66, %v70
      %73 = vst [vmem:[#allocation2] sm:$0xff] %v71
      %74 = vst [vmem:[#allocation2 + $0x8] sm:$0xff] %v71
    $region37: #{tpu_custom_call.1} parent=1 // pred_fallthru
      _
    %v75 = vld [vmem:[#allocation3] sm:$0xff]
    %v76 = vld [vmem:[#allocation3 + $0x8] sm:$0xff]
    %v77 = vld [vmem:[#allocation6] sm:$0xff]
    %v78 = vld [vmem:[#allocation6 + $0x8] sm:$0xff]
    %v79 = vld [vmem:[#allocation6 + $0x10] sm:$0xff]
    %v80 = vld [vmem:[#allocation6 + $0x18] sm:$0xff]
    %v81 = vld [vmem:[#allocation6 + $0x20] sm:$0xff]
    %v82 = vld [vmem:[#allocation6 + $0x28] sm:$0xff]
    %v83 = vld [vmem:[#allocation6 + $0x30] sm:$0xff]
    %v84 = vld [vmem:[#allocation6 + $0x38] sm:$0xff]
    %v85 = vld [vmem:[#allocation6 + $0x40] sm:$0xff]
    %v86 = vld [vmem:[#allocation6 + $0x48] sm:$0xff]
    %v87 = vld [vmem:[#allocation6 + $0x50] sm:$0xff]
    %v88 = vld [vmem:[#allocation6 + $0x58] sm:$0xff]
    %v89 = vld [vmem:[#allocation6 + $0x60] sm:$0xff]
    %v90 = vld [vmem:[#allocation6 + $0x68] sm:$0xff]
    %v91 = vld [vmem:[#allocation6 + $0x70] sm:$0xff]
    %v92 = vld [vmem:[#allocation6 + $0x78] sm:$0xff]
    %v93 = vld [vmem:[%s2] sm:$0x1]
    %v95 = vlaneseq
    %v96 = vshrl.u32 %v95, 7
    %v97 = vsub.s32 0, %v96
    %v98 = vrot.slane %v93, %v97
    %100 = vmatprep.subr.mxu0 0.0
    %101 = vmatpush1.msra.mxu0 %v77
    %102 = vmatprep.subr.mxu0 0.0
    %103 = vmatpush1.msra.mxu0 %v78
    %104 = vmatprep.subr.mxu0 0.0
    %105 = vmatpush1.msra.mxu0 %v79
    %106 = vmatprep.subr.mxu0 0.0
    %107 = vmatpush1.msra.mxu0 %v80
    %108 = vmatprep.subr.mxu0 0.0
    %109 = vmatpush1.msra.mxu0 %v81
    %110 = vmatprep.subr.mxu0 0.0
    %111 = vmatpush1.msra.mxu0 %v82
    %112 = vmatprep.subr.mxu0 0.0
    %113 = vmatpush1.msra.mxu0 %v83
    %114 = vmatprep.subr.mxu0 0.0
    %115 = vmatpush1.msra.mxu0 %v84
    %116 = vmatprep.subr.mxu0 0.0
    %117 = vmatpush1.msra.mxu0 %v85
    %118 = vmatprep.subr.mxu0 0.0
    %119 = vmatpush1.msra.mxu0 %v86
    %120 = vmatprep.subr.mxu0 0.0
    %121 = vmatpush1.msra.mxu0 %v87
    %122 = vmatprep.subr.mxu0 0.0
    %123 = vmatpush1.msra.mxu0 %v88
    %124 = vmatprep.subr.mxu0 0.0
    %125 = vmatpush1.msra.mxu0 %v89
    %126 = vmatprep.subr.mxu0 0.0
    %127 = vmatpush1.msra.mxu0 %v90
    %128 = vmatprep.subr.mxu0 0.0
    %129 = vmatpush1.msra.mxu0 %v91
    %130 = vmatprep.subr.mxu0 0.0
    %131 = vmatpush1.msra.mxu0 %v92
    %132 = vmatprep.subr.mxu0 0.0
    %133 = vmatpush1.msra.mxu0 0.0
    %134 = vmatprep.subr.mxu0 0.0
    %135 = vmatpush1.msra.mxu0 0.0
    %136 = vmatprep.subr.mxu0 0.0
    %137 = vmatpush1.msra.mxu0 0.0
    %138 = vmatprep.subr.mxu0 0.0
    %139 = vmatpush1.msra.mxu0 0.0
    %140 = vmatprep.subr.mxu0 0.0
    %141 = vmatpush1.msra.mxu0 0.0
    %142 = vmatprep.subr.mxu0 0.0
    %143 = vmatpush1.msra.mxu0 0.0
    %144 = vmatprep.subr.mxu0 0.0
    %145 = vmatpush1.msra.mxu0 0.0
    %146 = vmatprep.subr.mxu0 0.0
    %147 = vmatpush1.msra.mxu0 0.0
    %148 = vmatprep.subr.mxu0 0.0
    %149 = vmatpush1.msra.mxu0 0.0
    %150 = vmatprep.subr.mxu0 0.0
    %151 = vmatpush1.msra.mxu0 0.0
    %152 = vmatprep.subr.mxu0 0.0
    %153 = vmatpush1.msra.mxu0 0.0
    %154 = vmatprep.subr.mxu0 0.0
    %155 = vmatpush1.msra.mxu0 0.0
    %156 = vmatprep.subr.mxu0 0.0
    %157 = vmatpush1.msra.mxu0 0.0
    %158 = vmatprep.subr.mxu0 0.0
    %159 = vmatpush1.msra.mxu0 0.0
    %160 = vmatprep.subr.mxu0 0.0
    %161 = vmatpush1.msra.mxu0 0.0
    %162 = vmatprep.subr.mxu0 0.0
    %163 = vmatpush1.msra.mxu0 0.0
    %164 = vmatprep.mubr.f32.mxu0 0.0
    %165 = vmatmul.mubr.f32.gmra.mrb[0].mxu0 %v75
    %v166 = vpop.f32.mrb[0].mxu0
    %v167 = vadd.f32 %v98, %v166
    %v168 = vpop.f32.mrb[0].mxu0
    %169 = vmatprep.mubr.f32.mxu0 0.0
    %170 = vmatmul.mubr.f32.gmra.mrb[0].mxu0 %v76
    %v171 = vpop.f32.mrb[0].mxu0
    %v172 = vadd.f32 %v98, %v171
    %v173 = vpop.f32.mrb[0].mxu0
    %174 = vdwg.mxu0
    %v175 = vmul.f32 %v167, 0.5
    %v176 = vmul.f32 %v172, 0.5
    %v177 = vmul.f32 %v167, 0.70710677
    %v178 = vmul.f32 %v172, 0.70710677
    %v179 = verf.f32.pop %v177
    %v180 = verf.f32.pop %v178
    %v181 = vadd.f32 %v179, 1.0
    %v182 = vadd.f32 %v180, 1.0
    %v183 = vmul.f32 %v175, %v181
    %v184 = vmul.f32 %v176, %v182
    %v185 = vld [vmem:[#allocation8] sm:$0xff]
    %v186 = vld [vmem:[#allocation8 + $0x8] sm:$0xff]
    %v187 = vld [vmem:[#allocation8 + $0x10] sm:$0xff]
    %v188 = vld [vmem:[#allocation8 + $0x18] sm:$0xff]
    %v189 = vld [vmem:[#allocation8 + $0x20] sm:$0xff]
    %v190 = vld [vmem:[#allocation8 + $0x28] sm:$0xff]
    %v191 = vld [vmem:[#allocation8 + $0x30] sm:$0xff]
    %v192 = vld [vmem:[#allocation8 + $0x38] sm:$0xff]
    %v193 = vld [vmem:[#allocation8 + $0x40] sm:$0xff]
    %v194 = vld [vmem:[#allocation8 + $0x48] sm:$0xff]
    %v195 = vld [vmem:[#allocation8 + $0x50] sm:$0xff]
    %v196 = vld [vmem:[#allocation8 + $0x58] sm:$0xff]
    %v197 = vld [vmem:[#allocation8 + $0x60] sm:$0xff]
    %v198 = vld [vmem:[#allocation8 + $0x68] sm:$0xff]
    %v199 = vld [vmem:[#allocation8 + $0x70] sm:$0xff]
    %v200 = vld [vmem:[#allocation8 + $0x78] sm:$0xff]
    %201 = vmatprep.subr.mxu0 0.0
    %202 = vmatpush1.msra.mxu0 %v185
    %203 = vmatprep.subr.mxu0 0.0
    %204 = vmatpush1.msra.mxu0 %v186
    %205 = vmatprep.subr.mxu0 0.0
    %206 = vmatpush1.msra.mxu0 %v187
    %207 = vmatprep.subr.mxu0 0.0
    %208 = vmatpush1.msra.mxu0 %v188
    %209 = vmatprep.subr.mxu0 0.0
    %210 = vmatpush1.msra.mxu0 %v189
    %211 = vmatprep.subr.mxu0 0.0
    %212 = vmatpush1.msra.mxu0 %v190
    %213 = vmatprep.subr.mxu0 0.0
    %214 = vmatpush1.msra.mxu0 %v191
    %215 = vmatprep.subr.mxu0 0.0
    %216 = vmatpush1.msra.mxu0 %v192
    %217 = vmatprep.subr.mxu0 0.0
    %218 = vmatpush1.msra.mxu0 %v193
    %219 = vmatprep.subr.mxu0 0.0
    %220 = vmatpush1.msra.mxu0 %v194
    %221 = vmatprep.subr.mxu0 0.0
    %222 = vmatpush1.msra.mxu0 %v195
    %223 = vmatprep.subr.mxu0 0.0
    %224 = vmatpush1.msra.mxu0 %v196
    %225 = vmatprep.subr.mxu0 0.0
    %226 = vmatpush1.msra.mxu0 %v197
    %227 = vmatprep.subr.mxu0 0.0
    %228 = vmatpush1.msra.mxu0 %v198
    %229 = vmatprep.subr.mxu0 0.0
    %230 = vmatpush1.msra.mxu0 %v199
    %231 = vmatprep.subr.mxu0 0.0
    %232 = vmatpush1.msra.mxu0 %v200
    %233 = vmatprep.subr.mxu0 0.0
    %234 = vmatpush1.msra.mxu0 0.0
    %235 = vmatprep.subr.mxu0 0.0
    %236 = vmatpush1.msra.mxu0 0.0
    %237 = vmatprep.subr.mxu0 0.0
    %238 = vmatpush1.msra.mxu0 0.0
    %239 = vmatprep.subr.mxu0 0.0
    %240 = vmatpush1.msra.mxu0 0.0
    %241 = vmatprep.subr.mxu0 0.0
    %242 = vmatpush1.msra.mxu0 0.0
    %243 = vmatprep.subr.mxu0 0.0
    %244 = vmatpush1.msra.mxu0 0.0
    %245 = vmatprep.subr.mxu0 0.0
    %246 = vmatpush1.msra.mxu0 0.0
    %247 = vmatprep.subr.mxu0 0.0
    %248 = vmatpush1.msra.mxu0 0.0
    %249 = vmatprep.subr.mxu0 0.0
    %250 = vmatpush1.msra.mxu0 0.0
    %251 = vmatprep.subr.mxu0 0.0
    %252 = vmatpush1.msra.mxu0 0.0
    %253 = vmatprep.subr.mxu0 0.0
    %254 = vmatpush1.msra.mxu0 0.0
    %255 = vmatprep.subr.mxu0 0.0
    %256 = vmatpush1.msra.mxu0 0.0
    %257 = vmatprep.subr.mxu0 0.0
    %258 = vmatpush1.msra.mxu0 0.0
    %259 = vmatprep.subr.mxu0 0.0
    %260 = vmatpush1.msra.mxu0 0.0
    %261 = vmatprep.subr.mxu0 0.0
    %262 = vmatpush1.msra.mxu0 0.0
    %263 = vmatprep.subr.mxu0 0.0
    %264 = vmatpush1.msra.mxu0 0.0
    %265 = vmatprep.mubr.f32.mxu0 0.0
    %266 = vmatmul.mubr.f32.gmra.mrb[0].mxu0 %v183
    %v267 = vpop.f32.mrb[0].mxu0
    %v268 = vadd.f32 0.0, %v267
    %v269 = vpop.f32.mrb[0].mxu0
    %270 = vmatprep.mubr.f32.mxu0 0.0
    %271 = vmatmul.mubr.f32.gmra.mrb[0].mxu0 %v184
    %v272 = vpop.f32.mrb[0].mxu0
    %v273 = vadd.f32 0.0, %v272
    %v274 = vpop.f32.mrb[0].mxu0
    %275 = vdwg.mxu0
    %p276 = scmp.ne.s32.totalorder 0, 0
    // Predicated region
    $region38: #{tpu_custom_call.1} parent=1 // pred_check
      %p277 = pneg %p276
    $region39: #{tpu_custom_call.1} parent=1 // pred_check_branch
      %279 = sbr.rel (%p277) target = $region41
    $region40: #{tpu_custom_call.1} parent=1 // pred_region
      %v280 = vld [vmem:[#allocation2] sm:$0xff]
      %v281 = vld [vmem:[#allocation2 + $0x8] sm:$0xff]
      %v282 = vadd.f32 %v280, %v268
      %v283 = vadd.f32 %v281, %v273
      %284 = vst [vmem:[#allocation2] sm:$0xff] %v282
      %285 = vst [vmem:[#allocation2 + $0x8] sm:$0xff] %v283
    $region41: #{tpu_custom_call.1} parent=1 // pred_fallthru
      _
    // Predicated region
    $region42: #{tpu_custom_call.1} parent=1 // pred_check
      %p286 = pneg %p62
    $region43: #{tpu_custom_call.1} parent=1 // pred_check_branch
      %288 = sbr.rel (%p286) target = $region45
    $region44: #{tpu_custom_call.1} parent=1 // pred_region
      %v289 = vld [vmem:[#allocation2] sm:$0xff]
      %v290 = vld [vmem:[#allocation2 + $0x8] sm:$0xff]
      %v291 = vadd.f32 %v289, %v268
      %v292 = vadd.f32 %v290, %v273
      %293 = vst [vmem:[#allocation9] sm:$0xff] %v291
      %294 = vst [vmem:[#allocation9 + $0x8] sm:$0xff] %v292
    $region45: #{tpu_custom_call.1} parent=1 // pred_fallthru
      _
    // Predicated region
    $region46: #{tpu_custom_call.1} parent=1 // pred_check
      _
    $region47: #{tpu_custom_call.1} parent=1 // pred_check_branch
      %296 = sbr.rel (0) target = $region49
    $region48: #{tpu_custom_call.1} parent=1 // pred_region
      %s298 = ssub.s32 256, 256
      %299 = vsyncadd [#allocation5], %s298
      %s300 = sshll.u32 [#allocation9], 4
      %s301 = int_to_ptr.vmem [resolvable:$true] %s300
      %306 = dma.vmem_to_hbm [thread:$0]  %s301, 256, %s5, [#allocation5], 128, 128, 8
    $region49: #{tpu_custom_call.1} parent=1 // pred_fallthru
      _
    // Predicated region
    $region50: #{tpu_custom_call.1} parent=1 // pred_check
      _
    $region51: #{tpu_custom_call.1} parent=1 // pred_check_branch
      %308 = sbr.rel (0) target = $region53
    $region52: #{tpu_custom_call.1} parent=1 // pred_region
      %309 = dma.done [#allocation5], 256
    $region53: #{tpu_custom_call.1} parent=1 // pred_fallthru
      _
    %310 = vsyncpa [#allocation4], 1
    %311 = vsyncpa [#allocation7], 1
    %312 = vsyncpa [#allocation5], 1

</llo_original>
